<compile_context>
chip_gen: v7x
topology: tpu7x:2x2x1
jax: 0.10.0
libtpu: 0.0.40
codegen_flags: <defaults>
</compile_context>

<pallas_src>
import functools

import jax
import jax.numpy as jnp
import numpy as np
from jax.experimental import pallas as pl
from jax.experimental.pallas import tpu as pltpu


def _round_up(x, m):
    return ((x + m - 1) // m) * m


def _sum_kernel(v_ref, out_ref, *, seq_len, seq_tile, mask_tail):
    # v_ref:   (seq_tile, batch_tile, v_tile)  value block, native dtype
    # out_ref: (batch_tile, v_tile)            resident f32 accumulator (seq axis)
    s_idx = pl.program_id(2)

    @pl.when(s_idx == 0)
    def _():
        out_ref[...] = jnp.zeros_like(out_ref)

    v = v_ref[...].astype(jnp.float32)
    if mask_tail:  # static: only emitted when S % seq_tile != 0
        sid = s_idx * seq_tile + jax.lax.broadcasted_iota(jnp.int32, v.shape, 0)
        v = jnp.where(sid < seq_len, v, 0.0)
    out_ref[...] += jnp.sum(v, axis=0)


def dot_attention(query, key, value, mask, *,
                  batch_tile=None, v_tile=None, seq_tile=None):
    """query (B,H), key (S,B,H), value (S,B,V), mask (S,B) bool (True = masked).
    Returns (context (B,V), weights (S,B,1)) -- same as the PyTorch module."""
    B, _H = query.shape            # query / key only fix shapes; numerically unused
    S, _, V = value.shape
    isz = value.dtype.itemsize
    sub = {4: 8, 2: 16, 1: 32}.get(isz, 8)      # sublane packing of value dtype

    # ---- batch tile: full dim for small B (always a legal block), else 128 rows
    if batch_tile is None:
        batch_tile = B if B <= 128 else 128     # 128 is a multiple of 8/16/32
    nb = pl.cdiv(B, batch_tile)

    # ---- V tile: lane-dense; full dim when small, else multiples of 128
    if v_tile is None:
        if V <= 128:
            v_tile = V
        else:
            v_tile = min(512, (V // 128) * 128)
        # give v7x's two TensorCores >= 2 parallel programs when possible
        if nb == 1 and pl.cdiv(V, v_tile) == 1 and v_tile >= 256:
            v_tile = _round_up(v_tile // 2, 128)
    nv = pl.cdiv(V, v_tile)

    # ---- seq tile: maximize inside a ~32 MiB pipelined-block budget, with
    #      correct accounting of sublane/lane padding of the VMEM blocks.
    if seq_tile is None:
        in_row_bytes = _round_up(batch_tile, sub) * _round_up(v_tile, 128) * isz
        out_blk_bytes = _round_up(batch_tile, 8) * _round_up(v_tile, 128) * 4
        budget = 32 * 1024 * 1024
        avail = max(budget - 2 * out_blk_bytes, 2 * in_row_bytes)
        seq_tile = max(1, avail // (2 * in_row_bytes))
        if seq_tile >= 8:
            seq_tile = (seq_tile // 8) * 8
    seq_tile = min(seq_tile, S)
    ns = pl.cdiv(S, seq_tile)

    kernel = functools.partial(_sum_kernel, seq_len=S, seq_tile=seq_tile,
                               mask_tail=(S % seq_tile) != 0)

    ctx_padded = pl.pallas_call(
        kernel,
        grid=(nb, nv, ns),
        in_specs=[pl.BlockSpec((seq_tile, batch_tile, v_tile),
                               lambda bi, vi, si: (si, bi, vi))],
        out_specs=pl.BlockSpec((batch_tile, v_tile), lambda bi, vi, si: (bi, vi)),
        out_shape=jax.ShapeDtypeStruct((nb * batch_tile, nv * v_tile), jnp.float32),
        compiler_params=pltpu.CompilerParams(
            dimension_semantics=("parallel", "parallel", "arbitrary"),
            vmem_limit_bytes=48 * 1024 * 1024),
        cost_estimate=pl.CostEstimate(
            flops=S * B * V, transcendentals=0,
            bytes_accessed=value.size * isz + nb * batch_tile * nv * v_tile * 4),
    )(value)

    w_dtype = jnp.result_type(query.dtype, key.dtype)
    out_dtype = jnp.result_type(w_dtype, value.dtype)

    # NaN-poison any batch row that has at least one masked position
    # (equivalent to multiplying by the 1.0/NaN weights before summing).
    ctx = ctx_padded[:B, :V]
    context = jnp.where(jnp.any(mask, axis=0)[:, None], jnp.nan, ctx).astype(out_dtype)
    weights = jnp.where(mask[:, :, None], jnp.nan, 1.0).astype(w_dtype)  # (S, B, 1)
    return context, weights


def dot_attention_ref(query, key, value, mask):
    """Literal JAX transcription of the PyTorch forward (for checking)."""
    f_att_s = jnp.matmul(query[:, None, :], jnp.transpose(key, (1, 2, 0)))  # (B,1,S)
    f_att = jnp.swapaxes(f_att_s, -1, -2)            # (B, S, 1)
    f_att = jnp.swapaxes(f_att, 0, 1)                # (S, B, 1)
    f_att = jnp.where(mask[:, :, None], -jnp.inf, f_att)
    mx = jnp.max(f_att, axis=-1, keepdims=True)
    e = jnp.exp(f_att - mx)
    weights = e / jnp.sum(e, axis=-1, keepdims=True)
    return (weights * value).sum(0), weights


if __name__ == "__main__":
    # DotAttention.__init__ defines no parameters, so there is nothing to init.
    B, S, H, V = 2, 8, 32, 32
    k1, k2, k3 = jax.random.split(jax.random.PRNGKey(0), 3)
    query = jax.random.normal(k1, (B, H), dtype=jnp.float32)
    key = jax.random.normal(k2, (S, B, H), dtype=jnp.float32)
    value = jax.random.normal(k3, (S, B, V), dtype=jnp.float32)
    # mask: True = masked.  One masked position exercises the masked_fill /
    # NaN-poisoning path (matches the PyTorch module's behaviour).
    mask = jnp.zeros((S, B), dtype=jnp.bool_).at[0, 1].set(True)

    ctx, wts = dot_attention(query, key, value, mask)
    jax.block_until_ready((ctx, wts))

    ctx_ref, wts_ref = dot_attention_ref(query, key, value, mask)
    assert ctx.shape == (B, V) and wts.shape == (S, B, 1)
    np.testing.assert_allclose(np.asarray(ctx), np.asarray(ctx_ref),
                               rtol=1e-3, atol=1e-3, equal_nan=True)
    np.testing.assert_allclose(np.asarray(wts), np.asarray(wts_ref),
                               rtol=1e-3, atol=1e-3, equal_nan=True)
    print("KERNEL_OK")
</pallas_src>

<mosaic_0001>
module attributes {stable_mosaic.version = 11 : i64} {
  func.func @_sum_kernel(%arg0: i32, %arg1: i32, %arg2: i32, %arg3: memref<8x2x32xf32, #tpu.memory_space<vmem>>, %arg4: memref<2x32xf32, #tpu.memory_space<vmem>>) attributes {dimension_semantics = [#tpu.dimension_semantics<parallel>, #tpu.dimension_semantics<parallel>, #tpu.dimension_semantics<arbitrary>], iteration_bounds = array<i64: 1, 1, 1>, scalar_prefetch = 0 : i64, scratch_operands = 0 : i64, tpu.core_type = #tpu.core_type<tc>, window_params = [{transform_indices = @transform_0, window_bounds = array<i64: 8, 2, 32>}, {transform_indices = @transform_1, window_bounds = array<i64: 2, 32>}]} {
    %c0_i32 = arith.constant 0 : i32
    %0 = arith.cmpi eq, %arg2, %c0_i32 : i32
    %1 = arith.extui %0 : i1 to i32
    %c0_i32_0 = arith.constant 0 : i32
    %2 = arith.cmpi ne, %1, %c0_i32_0 : i32
    scf.if %2 {
      %cst_7 = arith.constant 0.000000e+00 : f32
      %8 = vector.broadcast %cst_7 : f32 to vector<2x32xf32>
      %c0_8 = arith.constant 0 : index
      %c0_9 = arith.constant 0 : index
      %9 = vector.load %arg4[%c0_8, %c0_9] : memref<2x32xf32, #tpu.memory_space<vmem>>, vector<2x32xf32>
      tpu.vector_store %arg4[%c0_8, %c0_9], %8 {strides = array<i32>} : memref<2x32xf32, #tpu.memory_space<vmem>>, vector<2x32xf32>,
    } else {
    }
    %c0 = arith.constant 0 : index
    %c0_1 = arith.constant 0 : index
    %c0_2 = arith.constant 0 : index
    %3 = vector.load %arg3[%c0, %c0_1, %c0_2] : memref<8x2x32xf32, #tpu.memory_space<vmem>>, vector<8x2x32xf32>
    %c0_3 = arith.constant 0 : index
    %c0_4 = arith.constant 0 : index
    %4 = vector.load %arg4[%c0_3, %c0_4] : memref<2x32xf32, #tpu.memory_space<vmem>>, vector<2x32xf32>
    %cst = arith.constant dense<0.000000e+00> : vector<2x32xf32>
    %5 = vector.multi_reduction <add>, %3, %cst [0] : vector<8x2x32xf32> to vector<2x32xf32>
    %6 = arith.addf %4, %5 : vector<2x32xf32>
    %c0_5 = arith.constant 0 : index
    %c0_6 = arith.constant 0 : index
    %7 = vector.load %arg4[%c0_5, %c0_6] : memref<2x32xf32, #tpu.memory_space<vmem>>, vector<2x32xf32>
    tpu.vector_store %arg4[%c0_5, %c0_6], %6 {strides = array<i32>} : memref<2x32xf32, #tpu.memory_space<vmem>>, vector<2x32xf32>,
    return
  }
  func.func @transform_0(%arg0: i32, %arg1: i32, %arg2: i32) -> (i32, i32, i32) {
    %c0_i32 = arith.constant 0 : i32
    return %arg2, %arg0, %arg1 : i32, i32, i32
  }
  func.func @transform_1(%arg0: i32, %arg1: i32, %arg2: i32) -> (i32, i32) {
    %c0_i32 = arith.constant 0 : i32
    return %arg0, %arg1 : i32, i32
  }
}

</mosaic_0001>

<llo_original>
// kernel: tpu_custom_call.1
$region0: #{tpu_custom_call.1}
  #allocation0 [shape = 'u32[]', space=smem, size = 0x4, offset = 0x4, fixed_abs, tag = 'smem constant byte address 0x4 - core index']
  #allocation1 [shape = 'u32[144,128]{1,0:T(1,128)}', space=vmem, size = 0x12000, scoped, tag = 'internal scratch']
  %s0 = inlined_call_operand.hbm [shape: f32[8,2,32], index: 0, kind: input, shape index: {}]
  %s1 = inlined_call_operand.hbm [shape: f32[2,32], index: 1, kind: output, shape index: {}]
  %s2 = sld [smem:[#allocation0]]
  $region22: #{tpu_custom_call.1} parent=0
    _
  %s4 = ssub.s32 1, %s2
  %s5 = scalar_select 0, %s4, %s2
  $region1: #{tpu_custom_call.1} parent=0
    #allocation2 [shape = 'u8[8192]{0}', space=vmem, size = 0x2000, scoped, tag = 'input window, operand 0, single buffered']
    #allocation3 [shape = 's32[1]{0}', space=sflag, size = 0x4, scoped, tag = 'scoped memory for tpu_custom_call.1']
    #allocation4 [shape = 's32[1]{0}', space=sflag, size = 0x4, scoped, tag = 'scoped memory for tpu_custom_call.1']
    #allocation5 [shape = 'u8[1024]{0}', space=vmem, size = 0x400, scoped, tag = 'output window, operand 0, single buffered']
    %6 = vsyncpa [#allocation3], 0
    %7 = vsyncpa [#allocation4], 0
    // Predicated region
    $region2: #{tpu_custom_call.1} parent=1 // pred_check
      _
    $region3: #{tpu_custom_call.1} parent=1 // pred_check_branch
      %9 = sbr.rel (0) target = $region5
    $region4: #{tpu_custom_call.1} parent=1 // pred_region
      %s11 = ssub.s32 256, 256
      %12 = vsyncadd [#allocation3], %s11
      %s13 = sshll.u32 [#allocation2], 4
      %s14 = int_to_ptr.vmem [resolvable:$true] %s13
      %19 = dma.hbm_to_vmem [thread:$0]  %s0, 256, %s14, [#allocation3], 32, 32, 2
    $region5: #{tpu_custom_call.1} parent=1 // pred_fallthru
      _
    // Predicated region
    $region6: #{tpu_custom_call.1} parent=1 // pred_check
      _
    $region7: #{tpu_custom_call.1} parent=1 // pred_check_branch
      %21 = sbr.rel (0) target = $region9
    $region8: #{tpu_custom_call.1} parent=1 // pred_region
      %22 = dma.done [#allocation3], 256
    $region9: #{tpu_custom_call.1} parent=1 // pred_fallthru
      _
    %p23 = scmp.eq.s32.totalorder 0, 0
    // Predicated region
    $region10: #{tpu_custom_call.1} parent=1 // pred_check
      %p24 = pneg %p23
    $region11: #{tpu_custom_call.1} parent=1 // pred_check_branch
      %26 = sbr.rel (%p24) target = $region13
    $region12: #{tpu_custom_call.1} parent=1 // pred_region
      %vm27 = vcmask 254976
      %28 = vst.msk [vmem:[#allocation5] sm:$0x3] %vm27, 0.0
    $region13: #{tpu_custom_call.1} parent=1 // pred_fallthru
      _
    %v29 = vld [vmem:[#allocation2] sm:$0x3]
    %v30 = vld [vmem:[#allocation2 + $0x2] sm:$0x3]
    %v31 = vld [vmem:[#allocation2 + $0x4] sm:$0x3]
    %v32 = vld [vmem:[#allocation2 + $0x6] sm:$0x3]
    %v33 = vld [vmem:[#allocation2 + $0x8] sm:$0x3]
    %v34 = vld [vmem:[#allocation2 + $0xa] sm:$0x3]
    %v35 = vld [vmem:[#allocation2 + $0xc] sm:$0x3]
    %v36 = vld [vmem:[#allocation2 + $0xe] sm:$0x3]
    %v37 = vld [vmem:[#allocation5] sm:$0x3]
    %vm38 = vcmask 254976
    %v39 = vsel %vm38, %v29, 0.0
    %v40 = vsel %vm38, %v30, 0.0
    %v41 = vadd.f32 %v39, %v40
    %v42 = vsel %vm38, %v31, 0.0
    %v43 = vadd.f32 %v41, %v42
    %v44 = vsel %vm38, %v32, 0.0
    %v45 = vadd.f32 %v43, %v44
    %v46 = vsel %vm38, %v33, 0.0
    %v47 = vadd.f32 %v45, %v46
    %v48 = vsel %vm38, %v34, 0.0
    %v49 = vadd.f32 %v47, %v48
    %v50 = vsel %vm38, %v35, 0.0
    %v51 = vadd.f32 %v49, %v50
    %v52 = vsel %vm38, %v36, 0.0
    %v53 = vadd.f32 %v51, %v52
    %v54 = vadd.f32 %v37, %v53
    %55 = vst.msk [vmem:[#allocation5] sm:$0x3] %vm38, %v54
    // Predicated region
    $region14: #{tpu_custom_call.1} parent=1 // pred_check
      _
    $region15: #{tpu_custom_call.1} parent=1 // pred_check_branch
      %57 = sbr.rel (0) target = $region17
    $region16: #{tpu_custom_call.1} parent=1 // pred_region
      %s59 = ssub.s32 32, 32
      %60 = vsyncadd [#allocation4], %s59
      %s62 = sshll.u32 [#allocation5], 4
      %s63 = int_to_ptr.vmem [resolvable:$true] %s62
      %65 = dma.vmem_to_hbm [thread:$0]  %s63, 32, %s1, [#allocation4]
    $region17: #{tpu_custom_call.1} parent=1 // pred_fallthru
      _
    // Predicated region
    $region18: #{tpu_custom_call.1} parent=1 // pred_check
      _
    $region19: #{tpu_custom_call.1} parent=1 // pred_check_branch
      %67 = sbr.rel (0) target = $region21
    $region20: #{tpu_custom_call.1} parent=1 // pred_region
      %68 = dma.done [#allocation4], 32
    $region21: #{tpu_custom_call.1} parent=1 // pred_fallthru
      _
    %69 = vsyncpa [#allocation3], 1
    %70 = vsyncpa [#allocation4], 1

</llo_original>
